<compile_context>
chip_gen: v7x
topology: tpu7x:2x2x1
jax: 0.10.0
libtpu: 0.0.40
codegen_flags: <defaults>
</compile_context>

<pallas_src>
import jax
import jax.numpy as jnp
from jax import lax
from jax.experimental import pallas as pl
from jax.experimental.pallas import tpu as pltpu

EPS = 0.0          # GINConv default eps (not learnable: train_eps=False)
RESIDUAL = True    # module configured with residual=True

# Transposed-LHS matmul dimension numbers: contract lhs dim 0 with rhs dim 0.
_NT_DIM_NUMBERS = (((0,), (0,)), ((), ()))


def _round_up(v, m):
    return (v + m - 1) // m * m


# --------------------------------------------------------------------------
# Fused kernel: edge-tiled message + scatter-add, MLP epilogue on last step
# --------------------------------------------------------------------------
def _gine_fused_kernel(src_ref, dst_ref, ea_ref, x_ref,
                       w1_ref, b1_ref, w2_ref, b2_ref,
                       o_ref, agg_ref, xbf_ref):
    j = pl.program_id(0)
    n_pad = x_ref.shape[0]          # padded node count (static)
    et = ea_ref.shape[0]            # edge tile size (static)

    @pl.when(j == 0)
    def _init():
        agg_ref[...] = jnp.zeros_like(agg_ref)
        xbf_ref[...] = x_ref[...].astype(jnp.bfloat16)   # one-time bf16 copy of x

    # One shared iota; both one-hots in [n_pad, et] layout (lane-major indices).
    node_ids = lax.broadcasted_iota(jnp.int32, (n_pad, et), 0)
    gather_oh_t = (node_ids == src_ref[...]).astype(jnp.bfloat16)   # [n_pad, et]
    scatter_oh = (node_ids == dst_ref[...]).astype(jnp.bfloat16)    # [n_pad, et]

    # --- gather x[src]: transposed-LHS matmul on the MXU (exact 0/1 select) ---
    x_src = lax.dot_general(gather_oh_t, xbf_ref[...], _NT_DIM_NUMBERS,
                            preferred_element_type=jnp.float32)     # [et, D]

    # --- GINE message: ReLU(x_j + edge_attr), edge_attr upcast from bf16 ---
    msg = jnp.maximum(x_src + ea_ref[...].astype(jnp.float32), 0.0)  # [et, D]

    # --- scatter-add into node accumulator (padded dst == n_pad matches none) ---
    agg_ref[...] += jnp.dot(scatter_oh, msg.astype(jnp.bfloat16),
                            preferred_element_type=jnp.float32)      # [n_pad, D]

    # --- fused epilogue: GIN update + MLP + ReLU + residual on last edge tile ---
    @pl.when(j == pl.num_programs(0) - 1)
    def _epilogue():
        x = x_ref[...]                                                # [n_pad, D] f32
        h = (1.0 + EPS) * x + agg_ref[...]
        y = jnp.dot(h.astype(jnp.bfloat16), w1_ref[...],
                    preferred_element_type=jnp.float32) + b1_ref[...]
        y = jnp.maximum(y, 0.0)
        y = jnp.dot(y.astype(jnp.bfloat16), w2_ref[...],
                    preferred_element_type=jnp.float32) + b2_ref[...]
        y = jnp.maximum(y, 0.0)            # F.relu after the conv
        # dropout: identity in inference mode
        if RESIDUAL:
            y = x + y
        o_ref[...] = y.astype(o_ref.dtype)


# --------------------------------------------------------------------------
# Wrapper
# --------------------------------------------------------------------------
def gine_conv_layer(x, edge_index, edge_attr, w1, b1, w2, b2, *, edge_tile=2048):
    """x: [N, D] f32, edge_index: [2, E] i32, edge_attr: [E, D] f32."""
    n, d = x.shape
    e = edge_index.shape[1]
    src = edge_index[0].astype(jnp.int32)
    dst = edge_index[1].astype(jnp.int32)

    # ---- tile sizing + padding (no one-hot matrices built on the host) ----
    n_pad = _round_up(max(n, 8), 8)
    edge_tile = min(edge_tile, max(_round_up(e, 128), 128))
    e_pad = max(_round_up(e, edge_tile), edge_tile)     # >= 1 tile even if E == 0
    num_edge_tiles = e_pad // edge_tile

    x_pad = jnp.zeros((n_pad, d), jnp.float32).at[:n].set(x.astype(jnp.float32))
    # edge_attr streamed in bf16 (dominant HBM stream of the edge loop)
    ea_pad = jnp.zeros((e_pad, d), jnp.bfloat16).at[:e].set(edge_attr.astype(jnp.bfloat16))
    # padded edges: src -> node 0 (harmless gather), dst -> n_pad (matches no node)
    src_pad = jnp.zeros((e_pad,), jnp.int32).at[:e].set(src).reshape(1, e_pad)
    dst_pad = jnp.full((e_pad,), n_pad, jnp.int32).at[:e].set(dst).reshape(1, e_pad)

    w1_bf16 = w1.astype(jnp.bfloat16)
    w2_bf16 = w2.astype(jnp.bfloat16)
    b1_2d = b1.reshape(1, d).astype(jnp.float32)
    b2_2d = b2.reshape(1, d).astype(jnp.float32)

    # ---- VMEM budget: resident x(f32) + agg(f32) + x(bf16) + out(f32) + weights,
    #      plus double-buffered edge tiles.  Cap at 48 MiB (safe on v7x's 64 MiB
    #      physical); on v5e/v6e (128 MiB) raise toward ~100 MiB for huge graphs.
    resident_bytes = n_pad * d * (4 + 4 + 2 + 4) + 2 * d * d * 2 + 2 * d * 4
    edge_stream_bytes = 2 * (edge_tile * d * 2 + 2 * edge_tile * 4)
    vmem_limit = int(min(max(32 << 20, resident_bytes + edge_stream_bytes + (4 << 20)),
                         48 << 20))

    out_pad = pl.pallas_call(
        _gine_fused_kernel,
        out_shape=jax.ShapeDtypeStruct((n_pad, d), jnp.float32),
        grid_spec=pltpu.PrefetchScalarGridSpec(
            num_scalar_prefetch=0,
            grid=(num_edge_tiles,),
            in_specs=[
                pl.BlockSpec((1, edge_tile), lambda j: (0, j)),    # src (lane-major)
                pl.BlockSpec((1, edge_tile), lambda j: (0, j)),    # dst (lane-major)
                pl.BlockSpec((edge_tile, d), lambda j: (j, 0)),    # edge_attr tile (bf16)
                pl.BlockSpec((n_pad, d), lambda j: (0, 0)),        # x (f32), VMEM-resident
                pl.BlockSpec((d, d), lambda j: (0, 0)),            # W1 (bf16, resident)
                pl.BlockSpec((1, d), lambda j: (0, 0)),            # b1
                pl.BlockSpec((d, d), lambda j: (0, 0)),            # W2 (bf16, resident)
                pl.BlockSpec((1, d), lambda j: (0, 0)),            # b2
            ],
            out_specs=pl.BlockSpec((n_pad, d), lambda j: (0, 0)),  # final output (resident)
            scratch_shapes=[
                pltpu.VMEM((n_pad, d), jnp.float32),               # agg accumulator
                pltpu.VMEM((n_pad, d), jnp.bfloat16),              # bf16 copy of x
            ],
        ),
        compiler_params=pltpu.CompilerParams(
            dimension_semantics=("arbitrary",),                    # edge axis is a reduction
            vmem_limit_bytes=vmem_limit,
        ),
        cost_estimate=pl.CostEstimate(
            flops=int(4 * e_pad * n_pad * d + 2 * e_pad * d
                      + 4 * n_pad * d * d + 6 * n_pad * d),
            transcendentals=0,
            bytes_accessed=int(n_pad * d * 4 + e_pad * d * 2 + e_pad * 8
                               + 2 * d * d * 2 + 2 * d * 4 + n_pad * d * 4),
        ),
    )(src_pad, dst_pad, ea_pad, x_pad, w1_bf16, b1_2d, w2_bf16, b2_2d)

    return out_pad[:n]


# --------------------------------------------------------------------------
# Pure-JAX reference (exact f32 semantics of the PyTorch module)
# --------------------------------------------------------------------------
def reference(x, edge_index, edge_attr, w1, b1, w2, b2):
    src, dst = edge_index[0], edge_index[1]
    msg = jax.nn.relu(x[src] + edge_attr)
    agg = jnp.zeros_like(x).at[dst].add(msg)
    h = (1.0 + EPS) * x + agg
    y = jax.nn.relu(h @ w1 + b1) @ w2 + b2
    y = jax.nn.relu(y)
    return x + y if RESIDUAL else y


if __name__ == "__main__":
    key = jax.random.PRNGKey(0)
    N, E, D = 32, 64, 128   # nodes, edges, dim_in == dim_out (residual requires equality)

    k_x, k_ea, k_src, k_dst, k_w1, k_b1, k_w2, k_b2 = jax.random.split(key, 8)
    x = jax.random.normal(k_x, (N, D), dtype=jnp.float32)
    edge_attr = jax.random.normal(k_ea, (E, D), dtype=jnp.float32)
    src = jax.random.randint(k_src, (E,), 0, N, dtype=jnp.int32)
    dst = jax.random.randint(k_dst, (E,), 0, N, dtype=jnp.int32)
    edge_index = jnp.stack([src, dst], axis=0)

    # Parameters of nn.Sequential(Linear(D, D), ReLU, Linear(D, D))
    scale = 1.0 / jnp.sqrt(D)
    w1 = jax.random.uniform(k_w1, (D, D), jnp.float32, -scale, scale)
    b1 = jax.random.uniform(k_b1, (D,), jnp.float32, -scale, scale)
    w2 = jax.random.uniform(k_w2, (D, D), jnp.float32, -scale, scale)
    b2 = jax.random.uniform(k_b2, (D,), jnp.float32, -scale, scale)

    out = gine_conv_layer(x, edge_index, edge_attr, w1, b1, w2, b2)
    out = jax.block_until_ready(out)

    ref = reference(x, edge_index, edge_attr, w1, b1, w2, b2)
    assert out.shape == (N, D)
    # bf16 MXU operands / bf16 edge_attr stream (intentional) -> loosened tolerance
    # vs. the f32 reference.  Do not tighten without reverting dtypes to f32.
    max_err = jnp.max(jnp.abs(out - ref))
    assert jnp.allclose(out, ref, atol=1e-1, rtol=5e-2), \
        f"mismatch vs reference, max abs err={max_err}"
    print("KERNEL_OK")
</pallas_src>

<mosaic_0001>
module attributes {stable_mosaic.version = 11 : i64} {
  func.func @_gine_fused_kernel(%arg0: i32, %arg1: memref<1x128xi32, #tpu.memory_space<vmem>>, %arg2: memref<1x128xi32, #tpu.memory_space<vmem>>, %arg3: memref<128x128xbf16, #tpu.memory_space<vmem>>, %arg4: memref<32x128xf32, #tpu.memory_space<vmem>>, %arg5: memref<128x128xbf16, #tpu.memory_space<vmem>>, %arg6: memref<1x128xf32, #tpu.memory_space<vmem>>, %arg7: memref<128x128xbf16, #tpu.memory_space<vmem>>, %arg8: memref<1x128xf32, #tpu.memory_space<vmem>>, %arg9: memref<32x128xf32, #tpu.memory_space<vmem>>, %arg10: memref<32x128xf32, #tpu.memory_space<vmem>>, %arg11: memref<32x128xbf16, #tpu.memory_space<vmem>>) attributes {dimension_semantics = [#tpu.dimension_semantics<arbitrary>], iteration_bounds = array<i64: 1>, scalar_prefetch = 0 : i64, scratch_operands = 2 : i64, tpu.core_type = #tpu.core_type<tc>, window_params = [{transform_indices = @transform_0, window_bounds = array<i64: 1, 128>}, {transform_indices = @transform_1, window_bounds = array<i64: 1, 128>}, {transform_indices = @transform_2, window_bounds = array<i64: 128, 128>}, {pipeline_mode = #tpu.pipeline_mode<synchronous>, transform_indices = @transform_3, window_bounds = array<i64: 32, 128>}, {pipeline_mode = #tpu.pipeline_mode<synchronous>, transform_indices = @transform_4, window_bounds = array<i64: 128, 128>}, {pipeline_mode = #tpu.pipeline_mode<synchronous>, transform_indices = @transform_5, window_bounds = array<i64: 1, 128>}, {pipeline_mode = #tpu.pipeline_mode<synchronous>, transform_indices = @transform_6, window_bounds = array<i64: 128, 128>}, {pipeline_mode = #tpu.pipeline_mode<synchronous>, transform_indices = @transform_7, window_bounds = array<i64: 1, 128>}, {pipeline_mode = #tpu.pipeline_mode<synchronous>, transform_indices = @transform_8, window_bounds = array<i64: 32, 128>}]} {
    %c0_i32 = arith.constant 0 : i32
    %0 = arith.cmpi eq, %arg0, %c0_i32 : i32
    %1 = arith.extui %0 : i1 to i32
    %c0_i32_0 = arith.constant 0 : i32
    %2 = arith.cmpi ne, %1, %c0_i32_0 : i32
    scf.if %2 {
      %cst_16 = arith.constant 0.000000e+00 : f32
      %31 = vector.broadcast %cst_16 : f32 to vector<32x128xf32>
      %c0_17 = arith.constant 0 : index
      %c0_18 = arith.constant 0 : index
      %32 = vector.load %arg10[%c0_17, %c0_18] : memref<32x128xf32, #tpu.memory_space<vmem>>, vector<32x128xf32>
      tpu.vector_store %arg10[%c0_17, %c0_18], %31 {strides = array<i32>} : memref<32x128xf32, #tpu.memory_space<vmem>>, vector<32x128xf32>,
      %c0_19 = arith.constant 0 : index
      %c0_20 = arith.constant 0 : index
      %33 = vector.load %arg4[%c0_19, %c0_20] : memref<32x128xf32, #tpu.memory_space<vmem>>, vector<32x128xf32>
      %34 = arith.truncf %33 : vector<32x128xf32> to vector<32x128xbf16>
      %c0_21 = arith.constant 0 : index
      %c0_22 = arith.constant 0 : index
      %35 = vector.load %arg11[%c0_21, %c0_22] : memref<32x128xbf16, #tpu.memory_space<vmem>>, vector<32x128xbf16>
      tpu.vector_store %arg11[%c0_21, %c0_22], %34 {strides = array<i32>} : memref<32x128xbf16, #tpu.memory_space<vmem>>, vector<32x128xbf16>,
    } else {
    }
    %3 = tpu.iota {dimensions = array<i32: 0>} : vector<32x128xi32>
    %c0 = arith.constant 0 : index
    %c0_1 = arith.constant 0 : index
    %4 = vector.load %arg1[%c0, %c0_1] : memref<1x128xi32, #tpu.memory_space<vmem>>, vector<1x128xi32>
    %5 = vector.broadcast %4 : vector<1x128xi32> to vector<32x128xi32>
    %6 = arith.cmpi eq, %3, %5 : vector<32x128xi32>
    %7 = arith.extui %6 : vector<32x128xi1> to vector<32x128xi32>
    %8 = arith.sitofp %7 : vector<32x128xi32> to vector<32x128xf32>
    %9 = arith.truncf %8 : vector<32x128xf32> to vector<32x128xbf16>
    %c0_2 = arith.constant 0 : index
    %c0_3 = arith.constant 0 : index
    %10 = vector.load %arg2[%c0_2, %c0_3] : memref<1x128xi32, #tpu.memory_space<vmem>>, vector<1x128xi32>
    %11 = vector.broadcast %10 : vector<1x128xi32> to vector<32x128xi32>
    %12 = arith.cmpi eq, %3, %11 : vector<32x128xi32>
    %13 = arith.extui %12 : vector<32x128xi1> to vector<32x128xi32>
    %14 = arith.sitofp %13 : vector<32x128xi32> to vector<32x128xf32>
    %15 = arith.truncf %14 : vector<32x128xf32> to vector<32x128xbf16>
    %c0_4 = arith.constant 0 : index
    %c0_5 = arith.constant 0 : index
    %16 = vector.load %arg11[%c0_4, %c0_5] : memref<32x128xbf16, #tpu.memory_space<vmem>>, vector<32x128xbf16>
    %cst = arith.constant dense<0.000000e+00> : vector<128x128xf32>
    %17 = tpu.matmul %9, %16, %cst {dimension_numbers = #tpu.dot_dimension_numbers<[0], [0], [1], [1], [0, 1, 1, 1], [], []>} : vector<32x128xbf16>, vector<32x128xbf16>, vector<128x128xf32> -> vector<128x128xf32>
    %c0_6 = arith.constant 0 : index
    %c0_7 = arith.constant 0 : index
    %18 = vector.load %arg3[%c0_6, %c0_7] : memref<128x128xbf16, #tpu.memory_space<vmem>>, vector<128x128xbf16>
    %19 = arith.extf %18 : vector<128x128xbf16> to vector<128x128xf32>
    %20 = arith.addf %17, %19 : vector<128x128xf32>
    %cst_8 = arith.constant 0.000000e+00 : f32
    %21 = vector.broadcast %cst_8 : f32 to vector<128x128xf32>
    %22 = arith.maximumf %20, %21 : vector<128x128xf32>
    %c0_9 = arith.constant 0 : index
    %c0_10 = arith.constant 0 : index
    %23 = vector.load %arg10[%c0_9, %c0_10] : memref<32x128xf32, #tpu.memory_space<vmem>>, vector<32x128xf32>
    %24 = arith.truncf %22 : vector<128x128xf32> to vector<128x128xbf16>
    %cst_11 = arith.constant dense<0.000000e+00> : vector<32x128xf32>
    %25 = tpu.matmul %15, %24, %cst_11 {dimension_numbers = #tpu.dot_dimension_numbers<[1], [0], [0], [1], [0, 0, 1, 1], [], []>} : vector<32x128xbf16>, vector<128x128xbf16>, vector<32x128xf32> -> vector<32x128xf32>
    %26 = arith.addf %23, %25 : vector<32x128xf32>
    %c0_12 = arith.constant 0 : index
    %c0_13 = arith.constant 0 : index
    %27 = vector.load %arg10[%c0_12, %c0_13] : memref<32x128xf32, #tpu.memory_space<vmem>>, vector<32x128xf32>
    tpu.vector_store %arg10[%c0_12, %c0_13], %26 {strides = array<i32>} : memref<32x128xf32, #tpu.memory_space<vmem>>, vector<32x128xf32>,
    %c0_i32_14 = arith.constant 0 : i32
    %28 = arith.cmpi eq, %arg0, %c0_i32_14 : i32
    %29 = arith.extui %28 : i1 to i32
    %c0_i32_15 = arith.constant 0 : i32
    %30 = arith.cmpi ne, %29, %c0_i32_15 : i32
    scf.if %30 {
      %c0_16 = arith.constant 0 : index
      %c0_17 = arith.constant 0 : index
      %31 = vector.load %arg4[%c0_16, %c0_17] : memref<32x128xf32, #tpu.memory_space<vmem>>, vector<32x128xf32>
      %cst_18 = arith.constant 1.000000e+00 : f32
      %32 = vector.broadcast %cst_18 : f32 to vector<32x128xf32>
      %33 = arith.mulf %32, %31 : vector<32x128xf32>
      %c0_19 = arith.constant 0 : index
      %c0_20 = arith.constant 0 : index
      %34 = vector.load %arg10[%c0_19, %c0_20] : memref<32x128xf32, #tpu.memory_space<vmem>>, vector<32x128xf32>
      %35 = arith.addf %33, %34 : vector<32x128xf32>
      %36 = arith.truncf %35 : vector<32x128xf32> to vector<32x128xbf16>
      %c0_21 = arith.constant 0 : index
      %c0_22 = arith.constant 0 : index
      %37 = vector.load %arg5[%c0_21, %c0_22] : memref<128x128xbf16, #tpu.memory_space<vmem>>, vector<128x128xbf16>
      %cst_23 = arith.constant dense<0.000000e+00> : vector<32x128xf32>
      %38 = tpu.matmul %36, %37, %cst_23 {dimension_numbers = #tpu.dot_dimension_numbers<[1], [0], [0], [1], [0, 0, 1, 1], [], []>} : vector<32x128xbf16>, vector<128x128xbf16>, vector<32x128xf32> -> vector<32x128xf32>
      %c0_24 = arith.constant 0 : index
      %c0_25 = arith.constant 0 : index
      %39 = vector.load %arg6[%c0_24, %c0_25] : memref<1x128xf32, #tpu.memory_space<vmem>>, vector<1x128xf32>
      %40 = vector.broadcast %39 : vector<1x128xf32> to vector<32x128xf32>
      %41 = arith.addf %38, %40 : vector<32x128xf32>
      %cst_26 = arith.constant 0.000000e+00 : f32
      %42 = vector.broadcast %cst_26 : f32 to vector<32x128xf32>
      %43 = arith.maximumf %41, %42 : vector<32x128xf32>
      %44 = arith.truncf %43 : vector<32x128xf32> to vector<32x128xbf16>
      %c0_27 = arith.constant 0 : index
      %c0_28 = arith.constant 0 : index
      %45 = vector.load %arg7[%c0_27, %c0_28] : memref<128x128xbf16, #tpu.memory_space<vmem>>, vector<128x128xbf16>
      %cst_29 = arith.constant dense<0.000000e+00> : vector<32x128xf32>
      %46 = tpu.matmul %44, %45, %cst_29 {dimension_numbers = #tpu.dot_dimension_numbers<[1], [0], [0], [1], [0, 0, 1, 1], [], []>} : vector<32x128xbf16>, vector<128x128xbf16>, vector<32x128xf32> -> vector<32x128xf32>
      %c0_30 = arith.constant 0 : index
      %c0_31 = arith.constant 0 : index
      %47 = vector.load %arg8[%c0_30, %c0_31] : memref<1x128xf32, #tpu.memory_space<vmem>>, vector<1x128xf32>
      %48 = vector.broadcast %47 : vector<1x128xf32> to vector<32x128xf32>
      %49 = arith.addf %46, %48 : vector<32x128xf32>
      %cst_32 = arith.constant 0.000000e+00 : f32
      %50 = vector.broadcast %cst_32 : f32 to vector<32x128xf32>
      %51 = arith.maximumf %49, %50 : vector<32x128xf32>
      %52 = arith.addf %31, %51 : vector<32x128xf32>
      %c0_33 = arith.constant 0 : index
      %c0_34 = arith.constant 0 : index
      %53 = vector.load %arg9[%c0_33, %c0_34] : memref<32x128xf32, #tpu.memory_space<vmem>>, vector<32x128xf32>
      tpu.vector_store %arg9[%c0_33, %c0_34], %52 {strides = array<i32>} : memref<32x128xf32, #tpu.memory_space<vmem>>, vector<32x128xf32>,
    } else {
    }
    return
  }
  func.func @transform_0(%arg0: i32) -> (i32, i32) {
    %c0_i32 = arith.constant 0 : i32
    %c0_i32_0 = arith.constant 0 : i32
    return %c0_i32, %arg0 : i32, i32
  }
  func.func @transform_1(%arg0: i32) -> (i32, i32) {
    %c0_i32 = arith.constant 0 : i32
    %c0_i32_0 = arith.constant 0 : i32
    return %c0_i32, %arg0 : i32, i32
  }
  func.func @transform_2(%arg0: i32) -> (i32, i32) {
    %c0_i32 = arith.constant 0 : i32
    %c0_i32_0 = arith.constant 0 : i32
    return %arg0, %c0_i32 : i32, i32
  }
  func.func @transform_3(%arg0: i32) -> (i32, i32) {
    %c0_i32 = arith.constant 0 : i32
    %c0_i32_0 = arith.constant 0 : i32
    %c0_i32_1 = arith.constant 0 : i32
    return %c0_i32, %c0_i32_0 : i32, i32
  }
  func.func @transform_4(%arg0: i32) -> (i32, i32) {
    %c0_i32 = arith.constant 0 : i32
    %c0_i32_0 = arith.constant 0 : i32
    %c0_i32_1 = arith.constant 0 : i32
    return %c0_i32, %c0_i32_0 : i32, i32
  }
  func.func @transform_5(%arg0: i32) -> (i32, i32) {
    %c0_i32 = arith.constant 0 : i32
    %c0_i32_0 = arith.constant 0 : i32
    %c0_i32_1 = arith.constant 0 : i32
    return %c0_i32, %c0_i32_0 : i32, i32
  }
  func.func @transform_6(%arg0: i32) -> (i32, i32) {
    %c0_i32 = arith.constant 0 : i32
    %c0_i32_0 = arith.constant 0 : i32
    %c0_i32_1 = arith.constant 0 : i32
    return %c0_i32, %c0_i32_0 : i32, i32
  }
  func.func @transform_7(%arg0: i32) -> (i32, i32) {
    %c0_i32 = arith.constant 0 : i32
    %c0_i32_0 = arith.constant 0 : i32
    %c0_i32_1 = arith.constant 0 : i32
    return %c0_i32, %c0_i32_0 : i32, i32
  }
  func.func @transform_8(%arg0: i32) -> (i32, i32) {
    %c0_i32 = arith.constant 0 : i32
    %c0_i32_0 = arith.constant 0 : i32
    %c0_i32_1 = arith.constant 0 : i32
    return %c0_i32, %c0_i32_0 : i32, i32
  }
}

</mosaic_0001>

<llo_original>
// kernel: tpu_custom_call.1
$region0: #{tpu_custom_call.1}
  #allocation0 [shape = 'u32[]', space=smem, size = 0x4, offset = 0x4, fixed_abs, tag = 'smem constant byte address 0x4 - core index']
  #allocation1 [shape = 'u32[144,128]{1,0:T(1,128)}', space=vmem, size = 0x12000, scoped, tag = 'internal scratch']
  #allocation2 [shape = 'f32[32,128]{1,0:T(8,128)}', space=vmem, size = 0x4000, scoped, tag = 'scratch operand']
  #allocation3 [shape = 'bf16[32,128]{1,0:T(16,128)(2,1)}', space=vmem, size = 0x2000, scoped, tag = 'scratch operand']
  %s0 = inlined_call_operand.hbm [shape: s32[1,128], index: 0, kind: input, shape index: {}]
  %s1 = inlined_call_operand.vmem [shape: s32[1,128], index: 1, kind: input, shape index: {}]
  %s2 = inlined_call_operand.hbm [shape: bf16[128,128], index: 2, kind: input, shape index: {}]
  %s3 = inlined_call_operand.hbm [shape: f32[32,128], index: 3, kind: input, shape index: {}]
  %s4 = inlined_call_operand.hbm [shape: bf16[128,128], index: 4, kind: input, shape index: {}]
  %s5 = inlined_call_operand.vmem [shape: f32[1,128], index: 5, kind: input, shape index: {}]
  %s6 = inlined_call_operand.hbm [shape: bf16[128,128], index: 6, kind: input, shape index: {}]
  %s7 = inlined_call_operand.vmem [shape: f32[1,128], index: 7, kind: input, shape index: {}]
  %s8 = inlined_call_operand.hbm [shape: f32[32,128], index: 8, kind: output, shape index: {}]
  %s9 = sld [smem:[#allocation0]]
  $region70: #{tpu_custom_call.1} parent=0
    _
  %s11 = ssub.s32 1, %s9
  %s12 = scalar_select 0, %s11, %s9
  $region1: #{tpu_custom_call.1} parent=0
    #allocation4 [shape = 'u8[512]{0}', space=vmem, size = 0x400, scoped, tag = 'input window, operand 0, single buffered']
    #allocation5 [shape = 's32[1]{0}', space=sflag, size = 0x4, scoped, tag = 'scoped memory for tpu_custom_call.1']
    #allocation6 [shape = 's32[1]{0}', space=sflag, size = 0x4, scoped, tag = 'scoped memory for tpu_custom_call.1']
    #allocation7 [shape = 'u8[32768]{0}', space=vmem, size = 0x8000, scoped, tag = 'input window, operand 2, single buffered']
    #allocation8 [shape = 's32[1]{0}', space=sflag, size = 0x4, scoped, tag = 'scoped memory for tpu_custom_call.1']
    #allocation9 [shape = 'u8[16384]{0}', space=vmem, size = 0x4000, scoped, tag = 'input window, operand 3, single buffered']
    #allocation10 [shape = 'u8[32768]{0}', space=vmem, size = 0x8000, scoped, tag = 'input window, operand 4, single buffered']
    #allocation11 [shape = 's32[1]{0}', space=sflag, size = 0x4, scoped, tag = 'scoped memory for tpu_custom_call.1']
    #allocation12 [shape = 'u8[32768]{0}', space=vmem, size = 0x8000, scoped, tag = 'input window, operand 6, single buffered']
    #allocation13 [shape = 'u8[16384]{0}', space=vmem, size = 0x4000, scoped, tag = 'output window, operand 0, single buffered']
    %13 = vsyncpa [#allocation5], 0
    %14 = vsyncpa [#allocation8], 0
    %15 = vsyncpa [#allocation11], 0
    %16 = vsyncpa [#allocation6], 0
    // Predicated region
    $region2: #{tpu_custom_call.1} parent=1 // pred_check
      _
    $region3: #{tpu_custom_call.1} parent=1 // pred_check_branch
      %18 = sbr.rel (0) target = $region5
    $region4: #{tpu_custom_call.1} parent=1 // pred_region
      %s20 = ssub.s32 16, 16
      %21 = vsyncadd [#allocation5], %s20
      %s23 = sshll.u32 [#allocation4], 4
      %s24 = int_to_ptr.vmem [resolvable:$true] %s23
      %26 = dma.hbm_to_vmem [thread:$0]  %s0, 16, %s24, [#allocation5]
    $region5: #{tpu_custom_call.1} parent=1 // pred_fallthru
      _
    // Predicated region
    $region6: #{tpu_custom_call.1} parent=1 // pred_check
      _
    $region7: #{tpu_custom_call.1} parent=1 // pred_check_branch
      %28 = sbr.rel (0) target = $region9
    $region8: #{tpu_custom_call.1} parent=1 // pred_region
      _
    $region9: #{tpu_custom_call.1} parent=1 // pred_fallthru
      _
    // Predicated region
    $region10: #{tpu_custom_call.1} parent=1 // pred_check
      _
    $region11: #{tpu_custom_call.1} parent=1 // pred_check_branch
      %30 = sbr.rel (0) target = $region13
    $region12: #{tpu_custom_call.1} parent=1 // pred_region
      %s32 = ssub.s32 1024, 1024
      %33 = vsyncadd [#allocation8], %s32
      %s34 = sshll.u32 [#allocation7], 4
      %s35 = int_to_ptr.vmem [resolvable:$true] %s34
      %40 = dma.hbm_to_vmem [thread:$0]  %s2, 1024, %s35, [#allocation8], 64, 64, 4
    $region13: #{tpu_custom_call.1} parent=1 // pred_fallthru
      _
    // Predicated region
    $region14: #{tpu_custom_call.1} parent=1 // pred_check
      _
    $region15: #{tpu_custom_call.1} parent=1 // pred_check_branch
      %42 = sbr.rel (0) target = $region17
    $region16: #{tpu_custom_call.1} parent=1 // pred_region
      %s44 = ssub.s32 512, 512
      %45 = vsyncadd [#allocation8], %s44
      %s46 = sshll.u32 [#allocation9], 4
      %s47 = int_to_ptr.vmem [resolvable:$true] %s46
      %52 = dma.hbm_to_vmem [thread:$0]  %s3, 512, %s47, [#allocation8], 128, 128, 8
    $region17: #{tpu_custom_call.1} parent=1 // pred_fallthru
      _
    // Predicated region
    $region18: #{tpu_custom_call.1} parent=1 // pred_check
      _
    $region19: #{tpu_custom_call.1} parent=1 // pred_check_branch
      %54 = sbr.rel (0) target = $region21
    $region20: #{tpu_custom_call.1} parent=1 // pred_region
      %s56 = ssub.s32 1024, 1024
      %57 = vsyncadd [#allocation11], %s56
      %s58 = sshll.u32 [#allocation10], 4
      %s59 = int_to_ptr.vmem [resolvable:$true] %s58
      %64 = dma.hbm_to_vmem [thread:$0]  %s4, 1024, %s59, [#allocation11], 64, 64, 4
    $region21: #{tpu_custom_call.1} parent=1 // pred_fallthru
      _
    // Predicated region
    $region22: #{tpu_custom_call.1} parent=1 // pred_check
      _
    $region23: #{tpu_custom_call.1} parent=1 // pred_check_branch
      %66 = sbr.rel (0) target = $region25
    $region24: #{tpu_custom_call.1} parent=1 // pred_region
      _
    $region25: #{tpu_custom_call.1} parent=1 // pred_fallthru
      _
    // Predicated region
    $region26: #{tpu_custom_call.1} parent=1 // pred_check
      _
    $region27: #{tpu_custom_call.1} parent=1 // pred_check_branch
      %68 = sbr.rel (0) target = $region29
    $region28: #{tpu_custom_call.1} parent=1 // pred_region
      %s70 = ssub.s32 1024, 1024
      %71 = vsyncadd [#allocation11], %s70
      %s72 = sshll.u32 [#allocation12], 4
      %s73 = int_to_ptr.vmem [resolvable:$true] %s72
      %78 = dma.hbm_to_vmem [thread:$0]  %s6, 1024, %s73, [#allocation11], 64, 64, 4
    $region29: #{tpu_custom_call.1} parent=1 // pred_fallthru
      _
    // Predicated region
    $region30: #{tpu_custom_call.1} parent=1 // pred_check
      _
    $region31: #{tpu_custom_call.1} parent=1 // pred_check_branch
      %80 = sbr.rel (0) target = $region33
    $region32: #{tpu_custom_call.1} parent=1 // pred_region
      _
    $region33: #{tpu_custom_call.1} parent=1 // pred_fallthru
      _
    // Predicated region
    $region34: #{tpu_custom_call.1} parent=1 // pred_check
      _
    $region35: #{tpu_custom_call.1} parent=1 // pred_check_branch
      %82 = sbr.rel (0) target = $region37
    $region36: #{tpu_custom_call.1} parent=1 // pred_region
      %83 = dma.done [#allocation5], 16
    $region37: #{tpu_custom_call.1} parent=1 // pred_fallthru
      _
    // Predicated region
    $region38: #{tpu_custom_call.1} parent=1 // pred_check
      _
    $region39: #{tpu_custom_call.1} parent=1 // pred_check_branch
      %85 = sbr.rel (0) target = $region41
    $region40: #{tpu_custom_call.1} parent=1 // pred_region
      %86 = dma.done [#allocation8], 1024
    $region41: #{tpu_custom_call.1} parent=1 // pred_fallthru
      _
    // Predicated region
    $region42: #{tpu_custom_call.1} parent=1 // pred_check
      _
    $region43: #{tpu_custom_call.1} parent=1 // pred_check_branch
      %88 = sbr.rel (0) target = $region45
    $region44: #{tpu_custom_call.1} parent=1 // pred_region
      %89 = dma.done [#allocation8], 512
    $region45: #{tpu_custom_call.1} parent=1 // pred_fallthru
      _
    // Predicated region
    $region46: #{tpu_custom_call.1} parent=1 // pred_check
      _
    $region47: #{tpu_custom_call.1} parent=1 // pred_check_branch
      %91 = sbr.rel (0) target = $region49
    $region48: #{tpu_custom_call.1} parent=1 // pred_region
      %92 = dma.done [#allocation11], 1024
    $region49: #{tpu_custom_call.1} parent=1 // pred_fallthru
      _
    // Predicated region
    $region50: #{tpu_custom_call.1} parent=1 // pred_check
      _
    $region51: #{tpu_custom_call.1} parent=1 // pred_check_branch
      %94 = sbr.rel (0) target = $region53
    $region52: #{tpu_custom_call.1} parent=1 // pred_region
      %95 = dma.done [#allocation11], 1024
    $region53: #{tpu_custom_call.1} parent=1 // pred_fallthru
      _
    %p97 = scmp.eq.s32.totalorder 0, 0
    // Predicated region
    $region54: #{tpu_custom_call.1} parent=1 // pred_check
      %p98 = pneg %p97
    $region55: #{tpu_custom_call.1} parent=1 // pred_check_branch
      %100 = sbr.rel (%p98) target = $region57
    $region56: #{tpu_custom_call.1} parent=1 // pred_region
      %101 = vst [vmem:[#allocation2] sm:$0xff] 0.0
      %102 = vst [vmem:[#allocation2 + $0x8] sm:$0xff] 0.0
      %103 = vst [vmem:[#allocation2 + $0x10] sm:$0xff] 0.0
      %104 = vst [vmem:[#allocation2 + $0x18] sm:$0xff] 0.0
      %v105 = vld [vmem:[#allocation9] sm:$0xff]
      %v106 = vld [vmem:[#allocation9 + $0x8] sm:$0xff]
      %v107 = vld [vmem:[#allocation9 + $0x10] sm:$0xff]
      %v108 = vld [vmem:[#allocation9 + $0x18] sm:$0xff]
      %v109 = vpack.c.bf16 %v106, %v105
      %v110 = vpack.c.bf16 %v108, %v107
      %111 = vst [vmem:[#allocation3] sm:$0xff] %v109
      %112 = vst [vmem:[#allocation3 + $0x8] sm:$0xff] %v110
    $region57: #{tpu_custom_call.1} parent=1 // pred_fallthru
      _
    %v113 = vlaneseq
    %v114 = vshrl.u32 %v113, 7
    %v115 = vadd.s32 %v114, 8
    %v116 = vadd.s32 %v114, 16
    %v117 = vadd.s32 %v114, 24
    %v118 = vld [vmem:[#allocation4] sm:$0x1]
    %v119 = vlaneseq
    %v120 = vshrl.u32 %v119, 7
    %v121 = vsub.s32 0, %v120
    %v122 = vrot.slane %v118, %v121
    %vm123 = vcmp.eq.s32.totalorder %v114, %v122
    %vm124 = vcmp.eq.s32.totalorder %v115, %v122
    %vm125 = vcmp.eq.s32.totalorder %v116, %v122
    %vm126 = vcmp.eq.s32.totalorder %v117, %v122
    %v127 = vsel %vm123, 1, 0
    %v128 = vsel %vm124, 1, 0
    %v129 = vsel %vm125, 1, 0
    %v130 = vsel %vm126, 1, 0
    %v131 = vcvt.s32.f32 %v127
    %v132 = vcvt.s32.f32 %v128
    %v133 = vcvt.s32.f32 %v129
    %v134 = vcvt.s32.f32 %v130
    %v135 = vpack.c.bf16 %v132, %v131
    %v136 = vpack.c.bf16 %v134, %v133
    %v137 = vld [vmem:[%s1] sm:$0x1]
    %v138 = vlaneseq
    %v139 = vshrl.u32 %v138, 7
    %v140 = vsub.s32 0, %v139
    %v141 = vrot.slane %v137, %v140
    %vm142 = vcmp.eq.s32.totalorder %v114, %v141
    %vm143 = vcmp.eq.s32.totalorder %v115, %v141
    %vm144 = vcmp.eq.s32.totalorder %v116, %v141
    %vm145 = vcmp.eq.s32.totalorder %v117, %v141
    %v146 = vsel %vm142, 1, 0
    %v147 = vsel %vm143, 1, 0
    %v148 = vsel %vm144, 1, 0
    %v149 = vsel %vm145, 1, 0
    %v150 = vcvt.s32.f32 %v146
    %v151 = vcvt.s32.f32 %v147
    %v152 = vcvt.s32.f32 %v148
    %v153 = vcvt.s32.f32 %v149
    %v154 = vpack.c.bf16 %v151, %v150
    %v155 = vpack.c.bf16 %v153, %v152
    %v156 = vld [vmem:[#allocation3] sm:$0xff]
    %v157 = vld [vmem:[#allocation3 + $0x8] sm:$0xff]
    %v158 = vld [vmem:[#allocation7] sm:$0xf]
    %v159 = vld [vmem:[#allocation7 + $0x4] sm:$0xf]
    %v160 = vld [vmem:[#allocation7 + $0x8] sm:$0xf]
    %v161 = vld [vmem:[#allocation7 + $0xc] sm:$0xf]
    %v162 = vld [vmem:[#allocation7 + $0x10] sm:$0xf]
    %v163 = vld [vmem:[#allocation7 + $0x14] sm:$0xf]
    %v164 = vld [vmem:[#allocation7 + $0x18] sm:$0xf]
    %v165 = vld [vmem:[#allocation7 + $0x1c] sm:$0xf]
    %v166 = vld [vmem:[#allocation7 + $0x20] sm:$0xf]
    %v167 = vld [vmem:[#allocation7 + $0x24] sm:$0xf]
    %v168 = vld [vmem:[#allocation7 + $0x28] sm:$0xf]
    %v169 = vld [vmem:[#allocation7 + $0x2c] sm:$0xf]
    %v170 = vld [vmem:[#allocation7 + $0x30] sm:$0xf]
    %v171 = vld [vmem:[#allocation7 + $0x34] sm:$0xf]
    %v172 = vld [vmem:[#allocation7 + $0x38] sm:$0xf]
    %v173 = vld [vmem:[#allocation7 + $0x3c] sm:$0xf]
    %v174 = vunpack.c.l.bf16 %v158
    %v175 = vunpack.c.l.bf16 %v159
    %v176 = vunpack.c.l.bf16 %v160
    %v177 = vunpack.c.l.bf16 %v161
    %v178 = vunpack.c.l.bf16 %v162
    %v179 = vunpack.c.l.bf16 %v163
    %v180 = vunpack.c.l.bf16 %v164
    %v181 = vunpack.c.l.bf16 %v165
    %v182 = vunpack.c.l.bf16 %v166
    %v183 = vunpack.c.l.bf16 %v167
    %v184 = vunpack.c.l.bf16 %v168
    %v185 = vunpack.c.l.bf16 %v169
    %v186 = vunpack.c.l.bf16 %v170
    %v187 = vunpack.c.l.bf16 %v171
    %v188 = vunpack.c.l.bf16 %v172
    %v189 = vunpack.c.l.bf16 %v173
    %190 = vxpose.xlu0.c.b16.start [1/8] %v135, 128
    %191 = vxpose.xlu0.c.b16.cont [2/8] %v136, 128
    %192 = vxpose.xlu0.c.b16.cont [3/8] 0, 128
    %193 = vxpose.xlu0.c.b16.cont [4/8] 0, 128
    %194 = vxpose.xlu0.c.b16.cont [5/8] 0, 128
    %195 = vxpose.xlu0.c.b16.cont [6/8] 0, 128
    %196 = vxpose.xlu0.c.b16.cont [7/8] 0, 128
    %197 = vxpose.xlu0.c.b16.end [8/8] 0, 128
    %v198 = vpop.trf.xlu0
    %v199 = vpop.trf.xlu0
    %v200 = vpop.trf.xlu0
    %v201 = vpop.trf.xlu0
    %v202 = vpop.trf.xlu0
    %v203 = vpop.trf.xlu0
    %v204 = vpop.trf.xlu0
    %v205 = vpop.trf.xlu0
    %vm206 = vcmask 261120
    %v208 = vsel %vm206, %v198, 0
    %v211 = vsel %vm206, %v199, 0
    %v214 = vsel %vm206, %v200, 0
    %v217 = vsel %vm206, %v201, 0
    %v220 = vsel %vm206, %v202, 0
    %v223 = vsel %vm206, %v203, 0
    %v226 = vsel %vm206, %v204, 0
    %v229 = vsel %vm206, %v205, 0
    %231 = vmatprep.subr.bf16.mxu0 0
    %232 = vmatpush1.bf16.msra.mxu0 %v156
    %233 = vmatprep.subr.bf16.mxu0 0
    %234 = vmatpush1.bf16.msra.mxu0 %v157
    %235 = vmatprep.subr.bf16.mxu0 0
    %236 = vmatpush1.bf16.msra.mxu0 0
    %237 = vmatprep.subr.bf16.mxu0 0
    %238 = vmatpush1.bf16.msra.mxu0 0
    %239 = vmatprep.subr.bf16.mxu0 0
    %240 = vmatpush1.bf16.msra.mxu0 0
    %241 = vmatprep.subr.bf16.mxu0 0
    %242 = vmatpush1.bf16.msra.mxu0 0
    %243 = vmatprep.subr.bf16.mxu0 0
    %244 = vmatpush1.bf16.msra.mxu0 0
    %245 = vmatprep.subr.bf16.mxu0 0
    %246 = vmatpush1.bf16.msra.mxu0 0
    %247 = vmatprep.subr.bf16.mxu0 0
    %248 = vmatpush1.bf16.msra.mxu0 0
    %249 = vmatprep.subr.bf16.mxu0 0
    %250 = vmatpush1.bf16.msra.mxu0 0
    %251 = vmatprep.subr.bf16.mxu0 0
    %252 = vmatpush1.bf16.msra.mxu0 0
    %253 = vmatprep.subr.bf16.mxu0 0
    %254 = vmatpush1.bf16.msra.mxu0 0
    %255 = vmatprep.subr.bf16.mxu0 0
    %256 = vmatpush1.bf16.msra.mxu0 0
    %257 = vmatprep.subr.bf16.mxu0 0
    %258 = vmatpush1.bf16.msra.mxu0 0
    %259 = vmatprep.subr.bf16.mxu0 0
    %260 = vmatpush1.bf16.msra.mxu0 0
    %261 = vmatprep.subr.bf16.mxu0 0
    %262 = vmatpush1.bf16.msra.mxu0 0
    %263 = vmatprep.mubr.bf16.mxu0 0
    %264 = vmatmul.mubr.bf16.gmra.mrb[0].mxu0 %v208
    %v265 = vpop.f32.mrb[0].mxu0
    %v266 = vadd.f32 %v174, %v265
    %v267 = vpop.f32.mrb[0].mxu0
    %v268 = vpop.f32.mrb[0].mxu0
    %v269 = vadd.f32 %v175, %v268
    %v270 = vpop.f32.mrb[0].mxu0
    %271 = vmatprep.mubr.bf16.mxu0 0
    %272 = vmatmul.mubr.bf16.gmra.mrb[0].mxu0 %v211
    %v273 = vpop.f32.mrb[0].mxu0
    %v274 = vadd.f32 %v176, %v273
    %v275 = vpop.f32.mrb[0].mxu0
    %v276 = vpop.f32.mrb[0].mxu0
    %v277 = vadd.f32 %v177, %v276
    %v278 = vpop.f32.mrb[0].mxu0
    %279 = vmatprep.mubr.bf16.mxu0 0
    %280 = vmatmul.mubr.bf16.gmra.mrb[0].mxu0 %v214
    %v281 = vpop.f32.mrb[0].mxu0
    %v282 = vadd.f32 %v178, %v281
    %v283 = vpop.f32.mrb[0].mxu0
    %v284 = vpop.f32.mrb[0].mxu0
    %v285 = vadd.f32 %v179, %v284
    %v286 = vpop.f32.mrb[0].mxu0
    %287 = vmatprep.mubr.bf16.mxu0 0
    %288 = vmatmul.mubr.bf16.gmra.mrb[0].mxu0 %v217
    %v289 = vpop.f32.mrb[0].mxu0
    %v290 = vadd.f32 %v180, %v289
    %v291 = vpop.f32.mrb[0].mxu0
    %v292 = vpop.f32.mrb[0].mxu0
    %v293 = vadd.f32 %v181, %v292
    %v294 = vpop.f32.mrb[0].mxu0
    %295 = vmatprep.mubr.bf16.mxu0 0
    %296 = vmatmul.mubr.bf16.gmra.mrb[0].mxu0 %v220
    %v297 = vpop.f32.mrb[0].mxu0
    %v298 = vadd.f32 %v182, %v297
    %v299 = vpop.f32.mrb[0].mxu0
    %v300 = vpop.f32.mrb[0].mxu0
    %v301 = vadd.f32 %v183, %v300
    %v302 = vpop.f32.mrb[0].mxu0
    %303 = vmatprep.mubr.bf16.mxu0 0
    %304 = vmatmul.mubr.bf16.gmra.mrb[0].mxu0 %v223
    %v305 = vpop.f32.mrb[0].mxu0
    %v306 = vadd.f32 %v184, %v305
    %v307 = vpop.f32.mrb[0].mxu0
    %v308 = vpop.f32.mrb[0].mxu0
    %v309 = vadd.f32 %v185, %v308
    %v310 = vpop.f32.mrb[0].mxu0
    %311 = vmatprep.mubr.bf16.mxu0 0
    %312 = vmatmul.mubr.bf16.gmra.mrb[0].mxu0 %v226
    %v313 = vpop.f32.mrb[0].mxu0
    %v314 = vadd.f32 %v186, %v313
    %v315 = vpop.f32.mrb[0].mxu0
    %v316 = vpop.f32.mrb[0].mxu0
    %v317 = vadd.f32 %v187, %v316
    %v318 = vpop.f32.mrb[0].mxu0
    %319 = vmatprep.mubr.bf16.mxu0 0
    %320 = vmatmul.mubr.bf16.gmra.mrb[0].mxu0 %v229
    %v321 = vpop.f32.mrb[0].mxu0
    %v322 = vadd.f32 %v188, %v321
    %v323 = vpop.f32.mrb[0].mxu0
    %v324 = vpop.f32.mrb[0].mxu0
    %v325 = vadd.f32 %v189, %v324
    %v326 = vpop.f32.mrb[0].mxu0
    %327 = vdwg.mxu0
    %v328 = vmax.f32 %v266, 0.0
    %v329 = vmax.f32 %v269, 0.0
    %v330 = vmax.f32 %v274, 0.0
    %v331 = vmax.f32 %v277, 0.0
    %v332 = vmax.f32 %v282, 0.0
    %v333 = vmax.f32 %v285, 0.0
    %v334 = vmax.f32 %v290, 0.0
    %v335 = vmax.f32 %v293, 0.0
    %v336 = vmax.f32 %v298, 0.0
    %v337 = vmax.f32 %v301, 0.0
    %v338 = vmax.f32 %v306, 0.0
    %v339 = vmax.f32 %v309, 0.0
    %v340 = vmax.f32 %v314, 0.0
    %v341 = vmax.f32 %v317, 0.0
    %v342 = vmax.f32 %v322, 0.0
    %v343 = vmax.f32 %v325, 0.0
    %v344 = vld [vmem:[#allocation2] sm:$0xff]
    %v345 = vld [vmem:[#allocation2 + $0x8] sm:$0xff]
    %v346 = vld [vmem:[#allocation2 + $0x10] sm:$0xff]
    %v347 = vld [vmem:[#allocation2 + $0x18] sm:$0xff]
    %v348 = vpack.c.bf16 %v329, %v328
    %v349 = vpack.c.bf16 %v331, %v330
    %v350 = vpack.c.bf16 %v333, %v332
    %v351 = vpack.c.bf16 %v335, %v334
    %v352 = vpack.c.bf16 %v337, %v336
    %v353 = vpack.c.bf16 %v339, %v338
    %v354 = vpack.c.bf16 %v341, %v340
    %v355 = vpack.c.bf16 %v343, %v342
    %356 = vmatprep.subr.bf16.mxu0 0
    %357 = vmatpush1.bf16.msra.mxu0 %v348
    %358 = vmatprep.subr.bf16.mxu0 0
    %359 = vmatpush1.bf16.msra.mxu0 %v349
    %360 = vmatprep.subr.bf16.mxu0 0
    %361 = vmatpush1.bf16.msra.mxu0 %v350
    %362 = vmatprep.subr.bf16.mxu0 0
    %363 = vmatpush1.bf16.msra.mxu0 %v351
    %364 = vmatprep.subr.bf16.mxu0 0
    %365 = vmatpush1.bf16.msra.mxu0 %v352
    %366 = vmatprep.subr.bf16.mxu0 0
    %367 = vmatpush1.bf16.msra.mxu0 %v353
    %368 = vmatprep.subr.bf16.mxu0 0
    %369 = vmatpush1.bf16.msra.mxu0 %v354
    %370 = vmatprep.subr.bf16.mxu0 0
    %371 = vmatpush1.bf16.msra.mxu0 %v355
    %372 = vmatprep.subr.bf16.mxu0 0
    %373 = vmatpush1.bf16.msra.mxu0 0
    %374 = vmatprep.subr.bf16.mxu0 0
    %375 = vmatpush1.bf16.msra.mxu0 0
    %376 = vmatprep.subr.bf16.mxu0 0
    %377 = vmatpush1.bf16.msra.mxu0 0
    %378 = vmatprep.subr.bf16.mxu0 0
    %379 = vmatpush1.bf16.msra.mxu0 0
    %380 = vmatprep.subr.bf16.mxu0 0
    %381 = vmatpush1.bf16.msra.mxu0 0
    %382 = vmatprep.subr.bf16.mxu0 0
    %383 = vmatpush1.bf16.msra.mxu0 0
    %384 = vmatprep.subr.bf16.mxu0 0
    %385 = vmatpush1.bf16.msra.mxu0 0
    %386 = vmatprep.subr.bf16.mxu0 0
    %387 = vmatpush1.bf16.msra.mxu0 0
    %388 = vmatprep.mubr.bf16.mxu0 0
    %389 = vmatmul.mubr.bf16.gmra.mrb[0].mxu0 %v154
    %v390 = vpop.f32.mrb[0].mxu0
    %v391 = vadd.f32 0.0, %v390
    %v392 = vpop.f32.mrb[0].mxu0
    %v393 = vpop.f32.mrb[0].mxu0
    %v394 = vadd.f32 0.0, %v393
    %v395 = vpop.f32.mrb[0].mxu0
    %396 = vmatprep.mubr.bf16.mxu0 0
    %397 = vmatmul.mubr.bf16.gmra.mrb[0].mxu0 %v155
    %v398 = vpop.f32.mrb[0].mxu0
    %v399 = vadd.f32 0.0, %v398
    %v400 = vpop.f32.mrb[0].mxu0
    %v401 = vpop.f32.mrb[0].mxu0
    %v402 = vadd.f32 0.0, %v401
    %v403 = vpop.f32.mrb[0].mxu0
    %404 = vdwg.mxu0
    %v405 = vadd.f32 %v344, %v391
    %v406 = vadd.f32 %v345, %v394
    %v407 = vadd.f32 %v346, %v399
    %v408 = vadd.f32 %v347, %v402
    %409 = vst [vmem:[#allocation2] sm:$0xff] %v405
    %410 = vst [vmem:[#allocation2 + $0x8] sm:$0xff] %v406
    %411 = vst [vmem:[#allocation2 + $0x10] sm:$0xff] %v407
    %412 = vst [vmem:[#allocation2 + $0x18] sm:$0xff] %v408
    // Predicated region
    $region58: #{tpu_custom_call.1} parent=1 // pred_check
      %p413 = pneg %p97
    $region59: #{tpu_custom_call.1} parent=1 // pred_check_branch
      %415 = sbr.rel (%p413) target = $region61
    $region60: #{tpu_custom_call.1} parent=1 // pred_region
      %v416 = vld [vmem:[#allocation9] sm:$0xff]
      %v417 = vld [vmem:[#allocation9 + $0x8] sm:$0xff]
      %v418 = vld [vmem:[#allocation9 + $0x10] sm:$0xff]
      %v419 = vld [vmem:[#allocation9 + $0x18] sm:$0xff]
      %v420 = vld [vmem:[#allocation2] sm:$0xff]
      %v421 = vld [vmem:[#allocation2 + $0x8] sm:$0xff]
      %v422 = vld [vmem:[#allocation2 + $0x10] sm:$0xff]
      %v423 = vld [vmem:[#allocation2 + $0x18] sm:$0xff]
      %v424 = vadd.f32 %v416, %v420
      %v425 = vadd.f32 %v417, %v421
      %v426 = vadd.f32 %v418, %v422
      %v427 = vadd.f32 %v419, %v423
      %v428 = vpack.c.bf16 %v425, %v424
      %v429 = vpack.c.bf16 %v427, %v426
      %v430 = vld [vmem:[#allocation10] sm:$0xf]
      %v431 = vld [vmem:[#allocation10 + $0x4] sm:$0xf]
      %v432 = vld [vmem:[#allocation10 + $0x8] sm:$0xf]
      %v433 = vld [vmem:[#allocation10 + $0xc] sm:$0xf]
      %v434 = vld [vmem:[#allocation10 + $0x10] sm:$0xf]
      %v435 = vld [vmem:[#allocation10 + $0x14] sm:$0xf]
      %v436 = vld [vmem:[#allocation10 + $0x18] sm:$0xf]
      %v437 = vld [vmem:[#allocation10 + $0x1c] sm:$0xf]
      %v438 = vld [vmem:[#allocation10 + $0x20] sm:$0xf]
      %v439 = vld [vmem:[#allocation10 + $0x24] sm:$0xf]
      %v440 = vld [vmem:[#allocation10 + $0x28] sm:$0xf]
      %v441 = vld [vmem:[#allocation10 + $0x2c] sm:$0xf]
      %v442 = vld [vmem:[#allocation10 + $0x30] sm:$0xf]
      %v443 = vld [vmem:[#allocation10 + $0x34] sm:$0xf]
      %v444 = vld [vmem:[#allocation10 + $0x38] sm:$0xf]
      %v445 = vld [vmem:[#allocation10 + $0x3c] sm:$0xf]
      %v446 = vld [vmem:[%s5] sm:$0x1]
      %v448 = vlaneseq
      %v449 = vshrl.u32 %v448, 7
      %v450 = vsub.s32 0, %v449
      %v451 = vrot.slane %v446, %v450
      %v469 = vunpack.c.l.b16 %v430
      %v470 = vunpack.c.l.b16 %v431
      %v471 = vunpack.c.l.b16 %v432
      %v472 = vunpack.c.l.b16 %v433
      %v473 = vunpack.c.l.b16 %v434
      %v474 = vunpack.c.l.b16 %v435
      %v475 = vunpack.c.l.b16 %v436
      %v476 = vunpack.c.l.b16 %v437
      %v477 = vunpack.c.l.b16 %v438
      %v478 = vunpack.c.l.b16 %v439
      %v479 = vunpack.c.l.b16 %v440
      %v480 = vunpack.c.l.b16 %v441
      %v481 = vunpack.c.l.b16 %v442
      %v482 = vunpack.c.l.b16 %v443
      %v483 = vunpack.c.l.b16 %v444
      %v484 = vunpack.c.l.b16 %v445
      %v485 = vpack.c.b16 %v470, %v469
      %v486 = vpack.c.b16 %v472, %v471
      %v487 = vpack.c.b16 %v474, %v473
      %v488 = vpack.c.b16 %v476, %v475
      %v489 = vpack.c.b16 %v478, %v477
      %v490 = vpack.c.b16 %v480, %v479
      %v491 = vpack.c.b16 %v482, %v481
      %v492 = vpack.c.b16 %v484, %v483
      %501 = vmatprep.subr.bf16.mxu0 0
      %502 = vmatpush1.bf16.msra.mxu0 %v485
      %503 = vmatprep.subr.bf16.mxu0 0
      %504 = vmatpush1.bf16.msra.mxu0 %v486
      %505 = vmatprep.subr.bf16.mxu0 0
      %506 = vmatpush1.bf16.msra.mxu0 %v487
      %507 = vmatprep.subr.bf16.mxu0 0
      %508 = vmatpush1.bf16.msra.mxu0 %v488
      %509 = vmatprep.subr.bf16.mxu0 0
      %510 = vmatpush1.bf16.msra.mxu0 %v489
      %511 = vmatprep.subr.bf16.mxu0 0
      %512 = vmatpush1.bf16.msra.mxu0 %v490
      %513 = vmatprep.subr.bf16.mxu0 0
      %514 = vmatpush1.bf16.msra.mxu0 %v491
      %515 = vmatprep.subr.bf16.mxu0 0
      %516 = vmatpush1.bf16.msra.mxu0 %v492
      %517 = vmatprep.subr.bf16.mxu0 0
      %518 = vmatpush1.bf16.msra.mxu0 0
      %519 = vmatprep.subr.bf16.mxu0 0
      %520 = vmatpush1.bf16.msra.mxu0 0
      %521 = vmatprep.subr.bf16.mxu0 0
      %522 = vmatpush1.bf16.msra.mxu0 0
      %523 = vmatprep.subr.bf16.mxu0 0
      %524 = vmatpush1.bf16.msra.mxu0 0
      %525 = vmatprep.subr.bf16.mxu0 0
      %526 = vmatpush1.bf16.msra.mxu0 0
      %527 = vmatprep.subr.bf16.mxu0 0
      %528 = vmatpush1.bf16.msra.mxu0 0
      %529 = vmatprep.subr.bf16.mxu0 0
      %530 = vmatpush1.bf16.msra.mxu0 0
      %531 = vmatprep.subr.bf16.mxu0 0
      %532 = vmatpush1.bf16.msra.mxu0 0
      %533 = vmatprep.mubr.bf16.mxu0 0
      %534 = vmatmul.mubr.bf16.gmra.mrb[0].mxu0 %v428
      %v535 = vpop.f32.mrb[0].mxu0
      %v536 = vadd.f32 %v451, %v535
      %v537 = vpop.f32.mrb[0].mxu0
      %v538 = vpop.f32.mrb[0].mxu0
      %v539 = vadd.f32 %v451, %v538
      %v540 = vpop.f32.mrb[0].mxu0
      %541 = vmatprep.mubr.bf16.mxu0 0
      %542 = vmatmul.mubr.bf16.gmra.mrb[0].mxu0 %v429
      %v543 = vpop.f32.mrb[0].mxu0
      %v544 = vadd.f32 %v451, %v543
      %v545 = vpop.f32.mrb[0].mxu0
      %v546 = vpop.f32.mrb[0].mxu0
      %v547 = vadd.f32 %v451, %v546
      %v548 = vpop.f32.mrb[0].mxu0
      %549 = vdwg.mxu0
      %v550 = vmax.f32 %v536, 0.0
      %v551 = vmax.f32 %v539, 0.0
      %v552 = vmax.f32 %v544, 0.0
      %v553 = vmax.f32 %v547, 0.0
      %v554 = vpack.c.bf16 %v551, %v550
      %v555 = vpack.c.bf16 %v553, %v552
      %v556 = vld [vmem:[#allocation12] sm:$0xf]
      %v557 = vld [vmem:[#allocation12 + $0x4] sm:$0xf]
      %v558 = vld [vmem:[#allocation12 + $0x8] sm:$0xf]
      %v559 = vld [vmem:[#allocation12 + $0xc] sm:$0xf]
      %v560 = vld [vmem:[#allocation12 + $0x10] sm:$0xf]
      %v561 = vld [vmem:[#allocation12 + $0x14] sm:$0xf]
      %v562 = vld [vmem:[#allocation12 + $0x18] sm:$0xf]
      %v563 = vld [vmem:[#allocation12 + $0x1c] sm:$0xf]
      %v564 = vld [vmem:[#allocation12 + $0x20] sm:$0xf]
      %v565 = vld [vmem:[#allocation12 + $0x24] sm:$0xf]
      %v566 = vld [vmem:[#allocation12 + $0x28] sm:$0xf]
      %v567 = vld [vmem:[#allocation12 + $0x2c] sm:$0xf]
      %v568 = vld [vmem:[#allocation12 + $0x30] sm:$0xf]
      %v569 = vld [vmem:[#allocation12 + $0x34] sm:$0xf]
      %v570 = vld [vmem:[#allocation12 + $0x38] sm:$0xf]
      %v571 = vld [vmem:[#allocation12 + $0x3c] sm:$0xf]
      %v572 = vld [vmem:[%s7] sm:$0x1]
      %v574 = vlaneseq
      %v575 = vshrl.u32 %v574, 7
      %v576 = vsub.s32 0, %v575
      %v577 = vrot.slane %v572, %v576
      %v595 = vunpack.c.l.b16 %v556
      %v596 = vunpack.c.l.b16 %v557
      %v597 = vunpack.c.l.b16 %v558
      %v598 = vunpack.c.l.b16 %v559
      %v599 = vunpack.c.l.b16 %v560
      %v600 = vunpack.c.l.b16 %v561
      %v601 = vunpack.c.l.b16 %v562
      %v602 = vunpack.c.l.b16 %v563
      %v603 = vunpack.c.l.b16 %v564
      %v604 = vunpack.c.l.b16 %v565
      %v605 = vunpack.c.l.b16 %v566
      %v606 = vunpack.c.l.b16 %v567
      %v607 = vunpack.c.l.b16 %v568
      %v608 = vunpack.c.l.b16 %v569
      %v609 = vunpack.c.l.b16 %v570
      %v610 = vunpack.c.l.b16 %v571
      %v611 = vpack.c.b16 %v596, %v595
      %v612 = vpack.c.b16 %v598, %v597
      %v613 = vpack.c.b16 %v600, %v599
      %v614 = vpack.c.b16 %v602, %v601
      %v615 = vpack.c.b16 %v604, %v603
      %v616 = vpack.c.b16 %v606, %v605
      %v617 = vpack.c.b16 %v608, %v607
      %v618 = vpack.c.b16 %v610, %v609
      %627 = vmatprep.subr.bf16.mxu0 0
      %628 = vmatpush1.bf16.msra.mxu0 %v611
      %629 = vmatprep.subr.bf16.mxu0 0
      %630 = vmatpush1.bf16.msra.mxu0 %v612
      %631 = vmatprep.subr.bf16.mxu0 0
      %632 = vmatpush1.bf16.msra.mxu0 %v613
      %633 = vmatprep.subr.bf16.mxu0 0
      %634 = vmatpush1.bf16.msra.mxu0 %v614
      %635 = vmatprep.subr.bf16.mxu0 0
      %636 = vmatpush1.bf16.msra.mxu0 %v615
      %637 = vmatprep.subr.bf16.mxu0 0
      %638 = vmatpush1.bf16.msra.mxu0 %v616
      %639 = vmatprep.subr.bf16.mxu0 0
      %640 = vmatpush1.bf16.msra.mxu0 %v617
      %641 = vmatprep.subr.bf16.mxu0 0
      %642 = vmatpush1.bf16.msra.mxu0 %v618
      %643 = vmatprep.subr.bf16.mxu0 0
      %644 = vmatpush1.bf16.msra.mxu0 0
      %645 = vmatprep.subr.bf16.mxu0 0
      %646 = vmatpush1.bf16.msra.mxu0 0
      %647 = vmatprep.subr.bf16.mxu0 0
      %648 = vmatpush1.bf16.msra.mxu0 0
      %649 = vmatprep.subr.bf16.mxu0 0
      %650 = vmatpush1.bf16.msra.mxu0 0
      %651 = vmatprep.subr.bf16.mxu0 0
      %652 = vmatpush1.bf16.msra.mxu0 0
      %653 = vmatprep.subr.bf16.mxu0 0
      %654 = vmatpush1.bf16.msra.mxu0 0
      %655 = vmatprep.subr.bf16.mxu0 0
      %656 = vmatpush1.bf16.msra.mxu0 0
      %657 = vmatprep.subr.bf16.mxu0 0
      %658 = vmatpush1.bf16.msra.mxu0 0
      %659 = vmatprep.mubr.bf16.mxu0 0
      %660 = vmatmul.mubr.bf16.gmra.mrb[0].mxu0 %v554
      %v661 = vpop.f32.mrb[0].mxu0
      %v662 = vadd.f32 %v577, %v661
      %v663 = vpop.f32.mrb[0].mxu0
      %v664 = vpop.f32.mrb[0].mxu0
      %v665 = vadd.f32 %v577, %v664
      %v666 = vpop.f32.mrb[0].mxu0
      %667 = vmatprep.mubr.bf16.mxu0 0
      %668 = vmatmul.mubr.bf16.gmra.mrb[0].mxu0 %v555
      %v669 = vpop.f32.mrb[0].mxu0
      %v670 = vadd.f32 %v577, %v669
      %v671 = vpop.f32.mrb[0].mxu0
      %v672 = vpop.f32.mrb[0].mxu0
      %v673 = vadd.f32 %v577, %v672
      %v674 = vpop.f32.mrb[0].mxu0
      %675 = vdwg.mxu0
      %v676 = vmax.f32 %v662, 0.0
      %v677 = vmax.f32 %v665, 0.0
      %v678 = vmax.f32 %v670, 0.0
      %v679 = vmax.f32 %v673, 0.0
      %v680 = vadd.f32 %v416, %v676
      %v681 = vadd.f32 %v417, %v677
      %v682 = vadd.f32 %v418, %v678
      %v683 = vadd.f32 %v419, %v679
      %684 = vst [vmem:[#allocation13] sm:$0xff] %v680
      %685 = vst [vmem:[#allocation13 + $0x8] sm:$0xff] %v681
      %686 = vst [vmem:[#allocation13 + $0x10] sm:$0xff] %v682
      %687 = vst [vmem:[#allocation13 + $0x18] sm:$0xff] %v683
    $region61: #{tpu_custom_call.1} parent=1 // pred_fallthru
      _
    // Predicated region
    $region62: #{tpu_custom_call.1} parent=1 // pred_check
      _
    $region63: #{tpu_custom_call.1} parent=1 // pred_check_branch
      %689 = sbr.rel (0) target = $region65
    $region64: #{tpu_custom_call.1} parent=1 // pred_region
      %s691 = ssub.s32 512, 512
      %692 = vsyncadd [#allocation6], %s691
      %s693 = sshll.u32 [#allocation13], 4
      %s694 = int_to_ptr.vmem [resolvable:$true] %s693
      %699 = dma.vmem_to_hbm [thread:$0]  %s694, 512, %s8, [#allocation6], 128, 128, 8
    $region65: #{tpu_custom_call.1} parent=1 // pred_fallthru
      _
    // Predicated region
    $region66: #{tpu_custom_call.1} parent=1 // pred_check
      _
    $region67: #{tpu_custom_call.1} parent=1 // pred_check_branch
      %701 = sbr.rel (0) target = $region69
    $region68: #{tpu_custom_call.1} parent=1 // pred_region
      %702 = dma.done [#allocation6], 512
    $region69: #{tpu_custom_call.1} parent=1 // pred_fallthru
      _
    %703 = vsyncpa [#allocation5], 1
    %704 = vsyncpa [#allocation8], 1
    %705 = vsyncpa [#allocation11], 1
    %706 = vsyncpa [#allocation6], 1

</llo_original>
